<compile_context>
chip_gen: v7x
topology: tpu7x:2x2x1
jax: 0.10.0
libtpu: 0.0.40
codegen_flags: <defaults>
</compile_context>

<pallas_src>
import functools
import math

import jax
import jax.numpy as jnp
from jax.experimental import pallas as pl
from jax.experimental.pallas import tpu as pltpu


# ----------------------------- helpers --------------------------------------

_GELU_C = math.sqrt(2.0 / math.pi)


def _apply_activation(y, activation):
    # y is f32 (accumulator dtype); keep transcendental math in f32 (v5e EUP).
    if activation == "gelu_tanh":      # GELU(approximate='tanh') — decoder MLP
        return 0.5 * y * (1.0 + jnp.tanh(_GELU_C * (y + 0.044715 * y * y * y)))
    if activation == "gelu_exact":     # exact GELU — timm ViT MLP
        return 0.5 * y * (1.0 + jax.lax.erf(y / math.sqrt(2.0)))
    return y


@functools.lru_cache(maxsize=1)
def _hw():
    """(cap_m, cap_n, cap_k, vmem_limit_bytes), keyed off the generation's VMEM
    capacity: bigger blocks on 128-MiB parts (v4/v5e/v5p/v6e), conservative on
    v7x (64 MiB)."""
    try:
        vmem = pltpu.get_tpu_info().vmem_capacity_bytes
    except Exception:
        vmem = 64 << 20
    if vmem >= (100 << 20):
        return 512, 1024, 1024, 64 << 20
    return 256, 512, 512, 32 << 20


def _mosaic(dims):
    return pltpu.CompilerParams(dimension_semantics=dims,
                                vmem_limit_bytes=_hw()[3])


def _ceil_to(x, m):
    return ((x + m - 1) // m) * m


def _choose_tile(dim, cap, mult):
    """Return (tile, padded_dim).  A dim <= cap is taken whole (a full-extent
    block is always layout-legal); a larger dim is tiled at a multiple of
    `mult` and zero-padded up to a tile multiple — never the old full-dim
    fallback that could blow past VMEM."""
    if dim <= cap:
        return dim, dim
    tile = max(mult, (cap // mult) * mult)
    return tile, _ceil_to(dim, tile)


def _heads_per_group(n_head, hd):
    """Heads per attention grid step: aim for >=128 lanes per group so the
    per-group block loads/stores are lane-dense; always an exact divisor."""
    g = min(n_head, max(1, 128 // max(hd, 1)))
    while n_head % g:
        g -= 1
    return g


def _pack_qkv_groups(w, b, n_head, hd):
    """Permute c_attn output columns from [q|k|v] to group-packed
    [q_g0|k_g0|v_g0 | q_g1|k_g1|v_g1 | ...] so the attention kernel's group
    grid axis slices one contiguous lane-dense (T, 3*gw) block.  Identity when
    a single group covers all heads (demo sizes)."""
    d = n_head * hd
    hpg = _heads_per_group(n_head, hd)
    ng = n_head // hpg
    gw = hpg * hd
    idx = []
    for g in range(ng):
        for sec in range(3):            # q, k, v
            start = sec * d + g * gw
            idx.extend(range(start, start + gw))
    perm = jnp.asarray(idx, dtype=jnp.int32)
    return w[:, perm], b[perm]


# ----------------------- tiled linear (K-reduction grid) ---------------------

def _linear_kernel(*refs, activation, has_bias, has_res):
    x_ref, w_ref = refs[0], refs[1]
    pos = 2
    b_ref = r_ref = None
    if has_bias:
        b_ref = refs[pos]; pos += 1
    if has_res:
        r_ref = refs[pos]; pos += 1
    o_ref = refs[pos]
    acc_ref = refs[pos + 1]

    k = pl.program_id(2)

    @pl.when(k == 0)
    def _():
        acc_ref[...] = jnp.zeros_like(acc_ref)

    acc_ref[...] += jnp.dot(x_ref[...].astype(jnp.bfloat16),
                            w_ref[...].astype(jnp.bfloat16),
                            preferred_element_type=jnp.float32)

    @pl.when(k == pl.num_programs(2) - 1)
    def _():
        y = acc_ref[...]
        if has_bias:
            y = y + b_ref[...].astype(jnp.float32)
        y = _apply_activation(y, activation)
        if has_res:
            y = y + r_ref[...].astype(jnp.float32)
        o_ref[...] = y.astype(o_ref.dtype)


def linear(x, w, b=None, *, activation=None, residual=None,
           out_dtype=jnp.bfloat16):
    """y = act(x @ w + b) [+ residual].  x:(M,K) any float dtype; w:(K,N) bf16.
    bf16 MXU operands, f32 accumulation; non-divisible dims are zero-padded."""
    m, kdim = x.shape
    n = w.shape[1]
    cap_m, cap_n, cap_k, _ = _hw()
    tm, mp = _choose_tile(m, cap_m, 8)
    tn, npd = _choose_tile(n, cap_n, 128)
    tk, kp = _choose_tile(kdim, cap_k, 128)

    xp = x if (mp == m and kp == kdim) else jnp.pad(x, ((0, mp - m), (0, kp - kdim)))
    wp = w if (kp == kdim and npd == n) else jnp.pad(w, ((0, kp - kdim), (0, npd - n)))

    in_specs = [pl.BlockSpec((tm, tk), lambda i, j, kk: (i, kk)),
                pl.BlockSpec((tk, tn), lambda i, j, kk: (kk, j))]
    args = [xp, wp]
    if b is not None:
        bp = b.reshape(1, n)
        if npd != n:
            bp = jnp.pad(bp, ((0, 0), (0, npd - n)))
        in_specs.append(pl.BlockSpec((1, tn), lambda i, j, kk: (0, j)))
        args.append(bp)
    if residual is not None:
        rp = residual
        if mp != m or npd != n:
            rp = jnp.pad(residual, ((0, mp - m), (0, npd - n)))
        in_specs.append(pl.BlockSpec((tm, tn), lambda i, j, kk: (i, j)))
        args.append(rp)

    kern = functools.partial(_linear_kernel, activation=activation,
                             has_bias=b is not None, has_res=residual is not None)
    flops = 2 * m * n * kdim
    trans = m * n if activation else 0
    bytes_acc = 2 * (m * kdim + kdim * n) + m * n * jnp.dtype(out_dtype).itemsize
    out = pl.pallas_call(
        kern,
        out_shape=jax.ShapeDtypeStruct((mp, npd), out_dtype),
        grid=(mp // tm, npd // tn, kp // tk),
        in_specs=in_specs,
        out_specs=pl.BlockSpec((tm, tn), lambda i, j, kk: (i, j)),
        scratch_shapes=[pltpu.VMEM((tm, tn), jnp.float32)],
        compiler_params=_mosaic(("parallel", "parallel", "arbitrary")),
        cost_estimate=pl.CostEstimate(flops=flops, transcendentals=trans,
                                      bytes_accessed=int(bytes_acc)),
    )(*args)
    if mp != m or npd != n:
        out = out[:m, :n]
    return out


# -------------------- fused LayerNorm + linear (K un-tiled) ------------------

def _ln_linear_kernel(*refs, activation, has_bias, w_t, eps):
    x_ref, g_ref, bt_ref, w_ref = refs[0], refs[1], refs[2], refs[3]
    pos = 4
    b_ref = None
    if has_bias:
        b_ref = refs[pos]; pos += 1
    o_ref = refs[pos]
    xn_ref = refs[pos + 1]          # VMEM scratch (tm, K) bf16

    # LayerNorm once per row tile (j == 0), reused for every N tile.
    @pl.when(pl.program_id(1) == 0)
    def _():
        x = x_ref[...].astype(jnp.float32)        # stats in f32 (v5e: no bf16 VPU)
        mu = jnp.mean(x, axis=-1, keepdims=True)
        var = jnp.mean((x - mu) ** 2, axis=-1, keepdims=True)
        xn = (x - mu) * jax.lax.rsqrt(var + eps)
        xn = xn * g_ref[...].astype(jnp.float32) + bt_ref[...].astype(jnp.float32)
        xn_ref[...] = xn.astype(xn_ref.dtype)

    xn = xn_ref[...]
    w = w_ref[...].astype(jnp.bfloat16)
    if w_t:   # w block is (tn, K): contract last dims (tied-wte lm_head path).
        # TODO(synk): if the bundle shows a per-tile vxpose here, pre-transpose
        #             wte once in HBM instead (amortized across decode steps).
        y = jax.lax.dot_general(xn, w, (((1,), (1,)), ((), ())),
                                preferred_element_type=jnp.float32)
    else:
        y = jnp.dot(xn, w, preferred_element_type=jnp.float32)
    if has_bias:
        y = y + b_ref[...].astype(jnp.float32)
    y = _apply_activation(y, activation)
    o_ref[...] = y.astype(o_ref.dtype)


def ln_linear(x, ln_g, ln_b, w, b=None, *, activation=None, w_transposed=False,
              eps=1e-5, out_dtype=jnp.bfloat16):
    """y = act(LayerNorm(x) @ w + b).  K (features) kept whole per block (the
    LN statistics need full rows); M and N are tiled / padded."""
    m, kdim = x.shape
    n = w.shape[0] if w_transposed else w.shape[1]
    cap_m, cap_n, _, _ = _hw()
    tm, mp = _choose_tile(m, cap_m, 8)
    tn, npd = _choose_tile(n, cap_n, 128)

    xp = x if mp == m else jnp.pad(x, ((0, mp - m), (0, 0)))
    if npd == n:
        wp = w
    elif w_transposed:
        wp = jnp.pad(w, ((0, npd - n), (0, 0)))
    else:
        wp = jnp.pad(w, ((0, 0), (0, npd - n)))

    in_specs = [
        pl.BlockSpec((tm, kdim), lambda i, j: (i, 0)),
        pl.BlockSpec((1, kdim), lambda i, j: (0, 0)),
        pl.BlockSpec((1, kdim), lambda i, j: (0, 0)),
    ]
    if w_transposed:
        in_specs.append(pl.BlockSpec((tn, kdim), lambda i, j: (j, 0)))
    else:
        in_specs.append(pl.BlockSpec((kdim, tn), lambda i, j: (0, j)))
    args = [xp, ln_g.reshape(1, kdim), ln_b.reshape(1, kdim), wp]
    if b is not None:
        bp = b.reshape(1, n)
        if npd != n:
            bp = jnp.pad(bp, ((0, 0), (0, npd - n)))
        in_specs.append(pl.BlockSpec((1, tn), lambda i, j: (0, j)))
        args.append(bp)

    kern = functools.partial(_ln_linear_kernel, activation=activation,
                             has_bias=b is not None, w_t=w_transposed, eps=eps)
    flops = 2 * m * n * kdim + 8 * m * kdim
    trans = (m * n if activation else 0) + m        # + rsqrt per row
    bytes_acc = 2 * (m * kdim + kdim * n) + m * n * jnp.dtype(out_dtype).itemsize
    out = pl.pallas_call(
        kern,
        out_shape=jax.ShapeDtypeStruct((mp, npd), out_dtype),
        grid=(mp // tm, npd // tn),
        in_specs=in_specs,
        out_specs=pl.BlockSpec((tm, tn), lambda i, j: (i, j)),
        scratch_shapes=[pltpu.VMEM((tm, kdim), jnp.bfloat16)],
        compiler_params=_mosaic(("parallel", "arbitrary")),
        cost_estimate=pl.CostEstimate(flops=flops, transcendentals=trans,
                                      bytes_accessed=int(bytes_acc)),
    )(*args)
    if mp != m or npd != n:
        out = out[:m, :n]
    return out


# ------------------------------ attention kernels ----------------------------
# Grid = (batch, head_group); the group axis is "parallel" (v7x: both TCs).
# QKV weights are pre-packed group-major so each grid step's input block is a
# contiguous lane-dense (T, 3*gw) slab; the group output is one dense store.

def _self_attn_kernel(qkv_ref, o_ref, *, hpg, hd, scale, causal):
    t = qkv_ref.shape[1]
    gw = hpg * hd
    if causal:
        row = jax.lax.broadcasted_iota(jnp.int32, (t, t), 0)
        col = jax.lax.broadcasted_iota(jnp.int32, (t, t), 1)
        neg = jnp.where(col <= row, 0.0, -1e30)   # finite additive mask (no NaN)
    outs = []
    # TODO(synk): batching these per-head dots into one MXU call needs a
    #             head-major relayout (leading-dim transpose) Mosaic won't
    #             lower; the group grid axis + dense group store keep the
    #             HBM-facing traffic lane-dense instead.
    for h in range(hpg):
        q = qkv_ref[0, :, h * hd:(h + 1) * hd].astype(jnp.bfloat16)
        k = qkv_ref[0, :, gw + h * hd:gw + (h + 1) * hd].astype(jnp.bfloat16)
        v = qkv_ref[0, :, 2 * gw + h * hd:2 * gw + (h + 1) * hd].astype(jnp.bfloat16)
        s = jax.lax.dot_general(q, k, (((1,), (1,)), ((), ())),
                                preferred_element_type=jnp.float32) * scale
        if causal:
            s = s + neg
        m = jnp.max(s, axis=-1, keepdims=True)
        e = jnp.exp(s - m)                                   # f32 exp
        inv = pl.reciprocal(jnp.sum(e, axis=-1, keepdims=True), approx=True)
        o = jnp.dot(e.astype(jnp.bfloat16), v, preferred_element_type=jnp.float32)
        outs.append(o * inv)          # normalize after P·V (hd elems/row, not S)
    o_ref[0] = jnp.concatenate(outs, axis=-1).astype(o_ref.dtype)


def self_attention_mha(qkv, n_head, causal, out_dtype=jnp.bfloat16):
    """qkv: (B, T, 3C), group-packed -> (B, T, C).  No probs written to HBM."""
    b, t, c3 = qkv.shape
    c = c3 // 3
    hd = c // n_head
    hpg = _heads_per_group(n_head, hd)
    ng = n_head // hpg
    gw = hpg * hd
    kern = functools.partial(_self_attn_kernel, hpg=hpg, hd=hd,
                             scale=1.0 / math.sqrt(hd), causal=causal)
    return pl.pallas_call(
        kern,
        out_shape=jax.ShapeDtypeStruct((b, t, c), out_dtype),
        grid=(b, ng),
        in_specs=[pl.BlockSpec((1, t, 3 * gw), lambda i, g: (i, 0, g))],
        out_specs=pl.BlockSpec((1, t, gw), lambda i, g: (i, 0, g)),
        compiler_params=_mosaic(("parallel", "parallel")),
    )(qkv)


def _cross_attn_kernel(*refs, hpg, hd, scale, with_probs):
    q_ref, k_ref, v_ref, o_ref = refs[0], refs[1], refs[2], refs[3]
    p_ref = refs[4] if with_probs else None
    outs = []
    for h in range(hpg):
        q = q_ref[0, :, h * hd:(h + 1) * hd].astype(jnp.bfloat16)
        k = k_ref[0, :, h * hd:(h + 1) * hd].astype(jnp.bfloat16)
        v = v_ref[0, :, h * hd:(h + 1) * hd].astype(jnp.bfloat16)
        s = jax.lax.dot_general(q, k, (((1,), (1,)), ((), ())),
                                preferred_element_type=jnp.float32) * scale
        m = jnp.max(s, axis=-1, keepdims=True)
        e = jnp.exp(s - m)
        inv = pl.reciprocal(jnp.sum(e, axis=-1, keepdims=True), approx=True)
        if with_probs:
            p = e * inv
            p_ref[0, h] = p.astype(p_ref.dtype)
            o = jnp.dot(p.astype(jnp.bfloat16), v, preferred_element_type=jnp.float32)
        else:
            o = jnp.dot(e.astype(jnp.bfloat16), v,
                        preferred_element_type=jnp.float32) * inv
        outs.append(o)
    o_ref[0] = jnp.concatenate(outs, axis=-1).astype(o_ref.dtype)


def cross_attention_mha(q, k, v, n_head, return_probs, out_dtype=jnp.bfloat16):
    """q: (B, T, C), k/v: (B, S, C) -> (out (B, T, C), probs (B, H, T, S)|None).
    Probs are only materialized when requested (last decoder block)."""
    b, t, c = q.shape
    s_len = k.shape[1]
    hd = c // n_head
    hpg = _heads_per_group(n_head, hd)
    ng = n_head // hpg
    gw = hpg * hd
    kern = functools.partial(_cross_attn_kernel, hpg=hpg, hd=hd,
                             scale=hd ** (-0.5), with_probs=return_probs)
    in_specs = [pl.BlockSpec((1, t, gw), lambda i, g: (i, 0, g)),
                pl.BlockSpec((1, s_len, gw), lambda i, g: (i, 0, g)),
                pl.BlockSpec((1, s_len, gw), lambda i, g: (i, 0, g))]
    cp = _mosaic(("parallel", "parallel"))
    if return_probs:
        out, probs = pl.pallas_call(
            kern,
            out_shape=(jax.ShapeDtypeStruct((b, t, c), out_dtype),
                       jax.ShapeDtypeStruct((b, n_head, t, s_len), jnp.float32)),
            grid=(b, ng),
            in_specs=in_specs,
            out_specs=(pl.BlockSpec((1, t, gw), lambda i, g: (i, 0, g)),
                       pl.BlockSpec((1, hpg, t, s_len), lambda i, g: (i, g, 0, 0))),
            compiler_params=cp,
        )(q, k, v)
        return out, probs
    out = pl.pallas_call(
        kern,
        out_shape=jax.ShapeDtypeStruct((b, t, c), out_dtype),
        grid=(b, ng),
        in_specs=in_specs,
        out_specs=pl.BlockSpec((1, t, gw), lambda i, g: (i, 0, g)),
        compiler_params=cp,
    )(q, k, v)
    return out, None


# ------------------------------- model glue ---------------------------------

def self_attention_block(x, ln_g, ln_b, p, n_head, causal):
    """x + Attention(LN(x)); LN fused into QKV matmul, residual fused into proj."""
    b, t, c = x.shape
    x2d = x.reshape(b * t, c)
    qkv = ln_linear(x2d, ln_g, ln_b, p["c_attn_w"], p["c_attn_b"]).reshape(b, t, 3 * c)
    attn = self_attention_mha(qkv, n_head, causal)
    y = linear(attn.reshape(b * t, c), p["c_proj_w"], p["c_proj_b"], residual=x2d)
    return y.reshape(b, t, c)


def cross_attention_block(x, ln_g, ln_b, context, p, n_head, return_probs):
    """x + CrossAttention(LN(x), context); returns (new_x, attn_probs|None)."""
    b, t, c = x.shape
    s = context.shape[1]
    x2d = x.reshape(b * t, c)
    ctx2d = context.reshape(b * s, c)
    q = ln_linear(x2d, ln_g, ln_b, p["q_w"], p["q_b"]).reshape(b, t, c)
    k = linear(ctx2d, p["k_w"], p["k_b"]).reshape(b, s, c)
    v = linear(ctx2d, p["v_w"], p["v_b"]).reshape(b, s, c)
    out, probs = cross_attention_mha(q, k, v, n_head, return_probs)
    y = linear(out.reshape(b * t, c), p["c_proj_w"], p["c_proj_b"], residual=x2d)
    return y.reshape(b, t, c), probs


def mlp_block(x, ln_g, ln_b, p, activation):
    """x + MLP(LN(x)); LN+GELU fused into fc matmul, residual fused into proj."""
    b, t, c = x.shape
    x2d = x.reshape(b * t, c)
    h = ln_linear(x2d, ln_g, ln_b, p["c_fc_w"], p["c_fc_b"], activation=activation)
    y = linear(h, p["c_proj_w"], p["c_proj_b"], residual=x2d)
    return y.reshape(b, t, c)


def decoder_block(x, context, p, n_head, return_probs):
    x = self_attention_block(x, p["ln1_g"], p["ln1_b"], p["attn"], n_head, causal=True)
    x, probs = cross_attention_block(x, p["ln2_g"], p["ln2_b"], context, p["cross"],
                                     n_head, return_probs)
    x = mlp_block(x, p["ln3_g"], p["ln3_b"], p["mlp"], "gelu_tanh")
    return x, probs


def vit_block(x, p, n_head):
    x = self_attention_block(x, p["ln1_g"], p["ln1_b"], p["attn"], n_head, causal=False)
    x = mlp_block(x, p["ln2_g"], p["ln2_b"], p["mlp"], "gelu_exact")
    return x


def vit_forward_features(images, p, vcfg):
    b, c, hh, ww = images.shape
    patch = vcfg["patch"]
    nh, nw = hh // patch, ww // patch
    d = vcfg["dim"]
    # TODO(synk): fold this NCHW->patch-major relayout into the patch-embed
    #             matmul's index_map for real 224x224 inputs (extra HBM pass).
    patches = (images.reshape(b, c, nh, patch, nw, patch)
               .transpose(0, 2, 4, 1, 3, 5)
               .reshape(b, nh * nw, c * patch * patch))
    tok = linear(patches.reshape(b * nh * nw, -1), p["patch_w"], p["patch_b"])
    tok = tok.reshape(b, nh * nw, d).astype(jnp.float32)
    cls = jnp.broadcast_to(p["cls_token"], (b, 1, d))
    x = jnp.concatenate([cls, tok], axis=1) + p["pos_embed"][None]
    for blk in p["blocks"]:
        x = vit_block(x, blk, vcfg["heads"])
    return x   # pre-final-norm; final norm fused into output_reshape downstream


def decoder_forward(input_ids, encoder_output, p, dcfg):
    b, t_in = input_ids.shape
    t = min(t_in, dcfg["block_size"])                       # torch.narrow
    ids = input_ids[:, :t]
    pos = jnp.arange(t)
    # TODO(synk): embedding gather stays as XLA glue (dynamic gather has no
    #             clean rectangular BlockSpec equivalent at this scale).
    x = (jnp.take(p["wte"], ids, axis=0).astype(jnp.float32)
         + jnp.take(p["wpe"], pos, axis=0)[None])
    attn_probs = None
    n_layer = len(p["blocks"])
    for li, blk in enumerate(p["blocks"]):
        x, probs = decoder_block(x, encoder_output, blk, dcfg["n_head"],
                                 return_probs=(li == n_layer - 1))
        if probs is not None:
            attn_probs = probs
    c = dcfg["n_embd"]
    # ln_f fused with the weight-tied lm_head; wte consumed UNtransposed, no bias.
    logits = ln_linear(x.reshape(-1, c), p["lnf_g"], p["lnf_b"], p["wte"],
                       w_transposed=True, out_dtype=jnp.float32)
    return logits.reshape(b, t, dcfg["vocab_size"]), attn_probs


def vision_language_model(images, input_ids, params, cfg):
    feats = vit_forward_features(images, params["vit"], cfg["vit"])
    b, s, dv = feats.shape
    # ViT final LayerNorm fused with output_reshape (the 1024->768 Linear analog).
    ctx = ln_linear(feats.reshape(b * s, dv),
                    params["vit"]["norm_g"], params["vit"]["norm_b"],
                    params["out_w"], params["out_b"])
    ctx = ctx.reshape(b, s, cfg["dec"]["n_embd"])
    return decoder_forward(input_ids, ctx, params["dec"], cfg["dec"])


# ------------------------------- param init ---------------------------------

def init_params(key, cfg):
    keys = iter(jax.random.split(key, 512))

    def nk():
        return next(keys)

    def dense(din, dout):
        w = (jax.random.normal(nk(), (din, dout), jnp.float32) * 0.02).astype(jnp.bfloat16)
        b = jax.random.normal(nk(), (dout,), jnp.float32) * 0.02
        return w, b

    def attn_params(d, n_head):
        cw, cb = dense(d, 3 * d)
        cw, cb = _pack_qkv_groups(cw, cb, n_head, d // n_head)   # group-major QKV
        pw, pb = dense(d, d)
        return {"c_attn_w": cw, "c_attn_b": cb, "c_proj_w": pw, "c_proj_b": pb}

    def mlp_params(d):
        fw, fb = dense(d, 4 * d)
        pw, pb = dense(4 * d, d)
        return {"c_fc_w": fw, "c_fc_b": fb, "c_proj_w": pw, "c_proj_b": pb}

    def ln(d):
        return jnp.ones((d,), jnp.float32), jnp.zeros((d,), jnp.float32)

    vcfg, dcfg = cfg["vit"], cfg["dec"]
    dv, dd = vcfg["dim"], dcfg["n_embd"]
    n_tok = (vcfg["img"] // vcfg["patch"]) ** 2 + 1

    # vision tower
    patch_w, patch_b = dense(vcfg["in_chans"] * vcfg["patch"] ** 2, dv)
    vit_blocks = []
    for _ in range(vcfg["layers"]):
        g1, b1 = ln(dv)
        g2, b2 = ln(dv)
        vit_blocks.append({"ln1_g": g1, "ln1_b": b1, "ln2_g": g2, "ln2_b": b2,
                           "attn": attn_params(dv, vcfg["heads"]),
                           "mlp": mlp_params(dv)})
    ng_, nb_ = ln(dv)
    vit = {"patch_w": patch_w, "patch_b": patch_b,
           "cls_token": jax.random.normal(nk(), (1, dv), jnp.float32) * 0.02,
           "pos_embed": jax.random.normal(nk(), (n_tok, dv), jnp.float32) * 0.02,
           "blocks": vit_blocks, "norm_g": ng_, "norm_b": nb_}

    # decoder
    dec_blocks = []
    for _ in range(dcfg["n_layer"]):
        g1, b1 = ln(dd)
        g2, b2 = ln(dd)
        g3, b3 = ln(dd)
        qw, qb = dense(dd, dd)
        kw, kb = dense(dd, dd)
        vw, vb = dense(dd, dd)
        pw, pb = dense(dd, dd)
        dec_blocks.append({
            "ln1_g": g1, "ln1_b": b1, "ln2_g": g2, "ln2_b": b2,
            "ln3_g": g3, "ln3_b": b3,
            "attn": attn_params(dd, dcfg["n_head"]),
            "cross": {"q_w": qw, "q_b": qb, "k_w": kw, "k_b": kb,
                      "v_w": vw, "v_b": vb, "c_proj_w": pw, "c_proj_b": pb},
            "mlp": mlp_params(dd),
        })
    fg, fb = ln(dd)
    wte = (jax.random.normal(nk(), (dcfg["vocab_size"], dd), jnp.float32)
           * 0.02).astype(jnp.bfloat16)
    dec = {"wte": wte,
           "wpe": jax.random.normal(nk(), (dcfg["block_size"], dd), jnp.float32) * 0.02,
           "blocks": dec_blocks, "lnf_g": fg, "lnf_b": fb}

    out_w, out_b = dense(dv, dd)   # output_reshape
    return {"vit": vit, "dec": dec, "out_w": out_w, "out_b": out_b}


# ---------------------------------- main -------------------------------------

if __name__ == "__main__":
    cfg = {
        "vit": {"dim": 64, "heads": 4, "layers": 2, "patch": 4, "img": 16, "in_chans": 3},
        "dec": {"n_embd": 32, "n_head": 4, "n_layer": 2, "block_size": 16, "vocab_size": 64},
    }
    key = jax.random.PRNGKey(0)
    kp, ki, kt = jax.random.split(key, 3)
    params = init_params(kp, cfg)

    images = jax.random.normal(ki, (2, 3, 16, 16), jnp.float32)          # NCHW
    input_ids = jax.random.randint(kt, (2, 8), 0, cfg["dec"]["vocab_size"])

    logits, attn_probs = vision_language_model(images, input_ids, params, cfg)
    jax.block_until_ready((logits, attn_probs))

    n_ctx = (16 // 4) ** 2 + 1  # 17 vision tokens (patches + cls)
    assert logits.shape == (2, 8, cfg["dec"]["vocab_size"])
    assert attn_probs.shape == (2, cfg["dec"]["n_head"], 8, n_ctx)
    assert bool(jnp.all(jnp.isfinite(logits)))
    assert bool(jnp.all(jnp.isfinite(attn_probs)))
    print("KERNEL_OK")
</pallas_src>

<mosaic_0001>
module attributes {stable_mosaic.version = 11 : i64} {
  func.func @_linear_kernel(%arg0: i32, %arg1: i32, %arg2: i32, %arg3: memref<32x48xf32, #tpu.memory_space<vmem>>, %arg4: memref<48x64xbf16, #tpu.memory_space<vmem>>, %arg5: memref<1x64xf32, #tpu.memory_space<vmem>>, %arg6: memref<32x64xbf16, #tpu.memory_space<vmem>>, %arg7: memref<32x64xf32, #tpu.memory_space<vmem>>) attributes {dimension_semantics = [#tpu.dimension_semantics<parallel>, #tpu.dimension_semantics<parallel>, #tpu.dimension_semantics<arbitrary>], iteration_bounds = array<i64: 1, 1, 1>, scalar_prefetch = 0 : i64, scratch_operands = 1 : i64, tpu.core_type = #tpu.core_type<tc>, window_params = [{transform_indices = @transform_0, window_bounds = array<i64: 32, 48>}, {transform_indices = @transform_1, window_bounds = array<i64: 48, 64>}, {transform_indices = @transform_2, window_bounds = array<i64: 1, 64>}, {transform_indices = @transform_3, window_bounds = array<i64: 32, 64>}]} {
    %c0_i32 = arith.constant 0 : i32
    %0 = arith.cmpi eq, %arg2, %c0_i32 : i32
    %1 = arith.extui %0 : i1 to i32
    %c0_i32_0 = arith.constant 0 : i32
    %2 = arith.cmpi ne, %1, %c0_i32_0 : i32
    scf.if %2 {
      %cst_10 = arith.constant 0.000000e+00 : f32
      %13 = vector.broadcast %cst_10 : f32 to vector<32x64xf32>
      %c0_11 = arith.constant 0 : index
      %c0_12 = arith.constant 0 : index
      %14 = vector.load %arg7[%c0_11, %c0_12] : memref<32x64xf32, #tpu.memory_space<vmem>>, vector<32x64xf32>
      tpu.vector_store %arg7[%c0_11, %c0_12], %13 {strides = array<i32>} : memref<32x64xf32, #tpu.memory_space<vmem>>, vector<32x64xf32>,
    } else {
    }
    %c0 = arith.constant 0 : index
    %c0_1 = arith.constant 0 : index
    %3 = vector.load %arg7[%c0, %c0_1] : memref<32x64xf32, #tpu.memory_space<vmem>>, vector<32x64xf32>
    %c0_2 = arith.constant 0 : index
    %c0_3 = arith.constant 0 : index
    %4 = vector.load %arg3[%c0_2, %c0_3] : memref<32x48xf32, #tpu.memory_space<vmem>>, vector<32x48xf32>
    %5 = arith.truncf %4 : vector<32x48xf32> to vector<32x48xbf16>
    %c0_4 = arith.constant 0 : index
    %c0_5 = arith.constant 0 : index
    %6 = vector.load %arg4[%c0_4, %c0_5] : memref<48x64xbf16, #tpu.memory_space<vmem>>, vector<48x64xbf16>
    %cst = arith.constant dense<0.000000e+00> : vector<32x64xf32>
    %7 = tpu.matmul %5, %6, %cst {dimension_numbers = #tpu.dot_dimension_numbers<[1], [0], [0], [1], [0, 0, 1, 1], [], []>} : vector<32x48xbf16>, vector<48x64xbf16>, vector<32x64xf32> -> vector<32x64xf32>
    %8 = arith.addf %3, %7 : vector<32x64xf32>
    %c0_6 = arith.constant 0 : index
    %c0_7 = arith.constant 0 : index
    %9 = vector.load %arg7[%c0_6, %c0_7] : memref<32x64xf32, #tpu.memory_space<vmem>>, vector<32x64xf32>
    tpu.vector_store %arg7[%c0_6, %c0_7], %8 {strides = array<i32>} : memref<32x64xf32, #tpu.memory_space<vmem>>, vector<32x64xf32>,
    %c0_i32_8 = arith.constant 0 : i32
    %10 = arith.cmpi eq, %arg2, %c0_i32_8 : i32
    %11 = arith.extui %10 : i1 to i32
    %c0_i32_9 = arith.constant 0 : i32
    %12 = arith.cmpi ne, %11, %c0_i32_9 : i32
    scf.if %12 {
      %c0_10 = arith.constant 0 : index
      %c0_11 = arith.constant 0 : index
      %13 = vector.load %arg7[%c0_10, %c0_11] : memref<32x64xf32, #tpu.memory_space<vmem>>, vector<32x64xf32>
      %c0_12 = arith.constant 0 : index
      %c0_13 = arith.constant 0 : index
      %14 = vector.load %arg5[%c0_12, %c0_13] : memref<1x64xf32, #tpu.memory_space<vmem>>, vector<1x64xf32>
      %15 = vector.broadcast %14 : vector<1x64xf32> to vector<32x64xf32>
      %16 = arith.addf %13, %15 : vector<32x64xf32>
      %17 = arith.truncf %16 : vector<32x64xf32> to vector<32x64xbf16>
      %c0_14 = arith.constant 0 : index
      %c0_15 = arith.constant 0 : index
      %18 = vector.load %arg6[%c0_14, %c0_15] : memref<32x64xbf16, #tpu.memory_space<vmem>>, vector<32x64xbf16>
      tpu.vector_store %arg6[%c0_14, %c0_15], %17 {strides = array<i32>} : memref<32x64xbf16, #tpu.memory_space<vmem>>, vector<32x64xbf16>,
    } else {
    }
    return
  }
  func.func @transform_0(%arg0: i32, %arg1: i32, %arg2: i32) -> (i32, i32) {
    %c0_i32 = arith.constant 0 : i32
    return %arg0, %arg2 : i32, i32
  }
  func.func @transform_1(%arg0: i32, %arg1: i32, %arg2: i32) -> (i32, i32) {
    %c0_i32 = arith.constant 0 : i32
    return %arg2, %arg1 : i32, i32
  }
  func.func @transform_2(%arg0: i32, %arg1: i32, %arg2: i32) -> (i32, i32) {
    %c0_i32 = arith.constant 0 : i32
    %c0_i32_0 = arith.constant 0 : i32
    return %c0_i32, %arg1 : i32, i32
  }
  func.func @transform_3(%arg0: i32, %arg1: i32, %arg2: i32) -> (i32, i32) {
    %c0_i32 = arith.constant 0 : i32
    return %arg0, %arg1 : i32, i32
  }
}

</mosaic_0001>

<llo_original>
// kernel: tpu_custom_call.1
$region0: #{tpu_custom_call.1}
  #allocation0 [shape = 'u32[]', space=smem, size = 0x4, offset = 0x4, fixed_abs, tag = 'smem constant byte address 0x4 - core index']
  #allocation1 [shape = 'u32[144,128]{1,0:T(1,128)}', space=vmem, size = 0x12000, scoped, tag = 'internal scratch']
  #allocation2 [shape = 'f32[32,64]{1,0:T(8,128)}', space=vmem, size = 0x4000, scoped, tag = 'scratch operand']
  %s0 = inlined_call_operand.hbm [shape: f32[32,48], index: 0, kind: input, shape index: {}]
  %s1 = inlined_call_operand.hbm [shape: bf16[48,64], index: 1, kind: input, shape index: {}]
  %s2 = inlined_call_operand.vmem [shape: f32[1,64], index: 2, kind: input, shape index: {}]
  %s3 = inlined_call_operand.hbm [shape: bf16[32,64], index: 3, kind: output, shape index: {}]
  %s4 = sld [smem:[#allocation0]]
  $region38: #{tpu_custom_call.1} parent=0
    _
  %s6 = ssub.s32 1, %s4
  %s7 = scalar_select 0, %s6, %s4
  $region1: #{tpu_custom_call.1} parent=0
    #allocation3 [shape = 'u8[16384]{0}', space=vmem, size = 0x4000, scoped, tag = 'input window, operand 0, single buffered']
    #allocation4 [shape = 's32[1]{0}', space=sflag, size = 0x4, scoped, tag = 'scoped memory for tpu_custom_call.1']
    #allocation5 [shape = 's32[1]{0}', space=sflag, size = 0x4, scoped, tag = 'scoped memory for tpu_custom_call.1']
    #allocation6 [shape = 'u8[12288]{0}', space=vmem, size = 0x3000, scoped, tag = 'input window, operand 1, single buffered']
    #allocation7 [shape = 's32[1]{0}', space=sflag, size = 0x4, scoped, tag = 'scoped memory for tpu_custom_call.1']
    #allocation8 [shape = 'u8[8192]{0}', space=vmem, size = 0x2000, scoped, tag = 'output window, operand 0, single buffered']
    %8 = vsyncpa [#allocation4], 0
    %9 = vsyncpa [#allocation7], 0
    %10 = vsyncpa [#allocation5], 0
    // Predicated region
    $region2: #{tpu_custom_call.1} parent=1 // pred_check
      _
    $region3: #{tpu_custom_call.1} parent=1 // pred_check_branch
      %12 = sbr.rel (0) target = $region5
    $region4: #{tpu_custom_call.1} parent=1 // pred_region
      %s14 = ssub.s32 512, 512
      %15 = vsyncadd [#allocation4], %s14
      %s16 = sshll.u32 [#allocation3], 4
      %s17 = int_to_ptr.vmem [resolvable:$true] %s16
      %22 = dma.hbm_to_vmem [thread:$0]  %s0, 512, %s17, [#allocation4], 128, 128, 8
    $region5: #{tpu_custom_call.1} parent=1 // pred_fallthru
      _
    // Predicated region
    $region6: #{tpu_custom_call.1} parent=1 // pred_check
      _
    $region7: #{tpu_custom_call.1} parent=1 // pred_check_branch
      %24 = sbr.rel (0) target = $region9
    $region8: #{tpu_custom_call.1} parent=1 // pred_region
      %s26 = ssub.s32 384, 384
      %27 = vsyncadd [#allocation7], %s26
      %s28 = sshll.u32 [#allocation6], 4
      %s29 = int_to_ptr.vmem [resolvable:$true] %s28
      %34 = dma.hbm_to_vmem [thread:$0]  %s1, 384, %s29, [#allocation7], 64, 64, 4
    $region9: #{tpu_custom_call.1} parent=1 // pred_fallthru
      _
    // Predicated region
    $region10: #{tpu_custom_call.1} parent=1 // pred_check
      _
    $region11: #{tpu_custom_call.1} parent=1 // pred_check_branch
      %36 = sbr.rel (0) target = $region13
    $region12: #{tpu_custom_call.1} parent=1 // pred_region
      _
    $region13: #{tpu_custom_call.1} parent=1 // pred_fallthru
      _
    // Predicated region
    $region14: #{tpu_custom_call.1} parent=1 // pred_check
      _
    $region15: #{tpu_custom_call.1} parent=1 // pred_check_branch
      %38 = sbr.rel (0) target = $region17
    $region16: #{tpu_custom_call.1} parent=1 // pred_region
      %39 = dma.done [#allocation4], 512
    $region17: #{tpu_custom_call.1} parent=1 // pred_fallthru
      _
    // Predicated region
    $region18: #{tpu_custom_call.1} parent=1 // pred_check
      _
    $region19: #{tpu_custom_call.1} parent=1 // pred_check_branch
      %41 = sbr.rel (0) target = $region21
    $region20: #{tpu_custom_call.1} parent=1 // pred_region
      %42 = dma.done [#allocation7], 384
    $region21: #{tpu_custom_call.1} parent=1 // pred_fallthru
      _
    %p44 = scmp.eq.s32.totalorder 0, 0
    // Predicated region
    $region22: #{tpu_custom_call.1} parent=1 // pred_check
      %p45 = pneg %p44
    $region23: #{tpu_custom_call.1} parent=1 // pred_check_branch
      %47 = sbr.rel (%p45) target = $region25
    $region24: #{tpu_custom_call.1} parent=1 // pred_region
      %vm48 = vcmask 523264
      %49 = vst.msk [vmem:[#allocation2] sm:$0xff] %vm48, 0.0
      %50 = vst.msk [vmem:[#allocation2 + $0x8] sm:$0xff] %vm48, 0.0
      %51 = vst.msk [vmem:[#allocation2 + $0x10] sm:$0xff] %vm48, 0.0
      %52 = vst.msk [vmem:[#allocation2 + $0x18] sm:$0xff] %vm48, 0.0
    $region25: #{tpu_custom_call.1} parent=1 // pred_fallthru
      _
    %v53 = vld [vmem:[#allocation2] sm:$0xff]
    %v54 = vld [vmem:[#allocation2 + $0x8] sm:$0xff]
    %v55 = vld [vmem:[#allocation2 + $0x10] sm:$0xff]
    %v56 = vld [vmem:[#allocation2 + $0x18] sm:$0xff]
    %v57 = vld [vmem:[#allocation3] sm:$0xff]
    %v58 = vld [vmem:[#allocation3 + $0x8] sm:$0xff]
    %v59 = vld [vmem:[#allocation3 + $0x10] sm:$0xff]
    %v60 = vld [vmem:[#allocation3 + $0x18] sm:$0xff]
    %v61 = vpack.c.bf16 %v58, %v57
    %v62 = vpack.c.bf16 %v60, %v59
    %v63 = vld [vmem:[#allocation6] sm:$0xf]
    %v64 = vld [vmem:[#allocation6 + $0x4] sm:$0xf]
    %v65 = vld [vmem:[#allocation6 + $0x8] sm:$0xf]
    %v66 = vld [vmem:[#allocation6 + $0xc] sm:$0xf]
    %v67 = vld [vmem:[#allocation6 + $0x10] sm:$0xf]
    %v68 = vld [vmem:[#allocation6 + $0x14] sm:$0xf]
    %v75 = vunpack.c.l.b16 %v63
    %v76 = vunpack.c.l.b16 %v64
    %v77 = vunpack.c.l.b16 %v65
    %v78 = vunpack.c.l.b16 %v66
    %v79 = vunpack.c.l.b16 %v67
    %v80 = vunpack.c.l.b16 %v68
    %v81 = vpack.c.b16 %v76, %v75
    %v82 = vpack.c.b16 %v78, %v77
    %v83 = vpack.c.b16 %v80, %v79
    %vm87 = vcmask 392192
    %v89 = vsel %vm87, %v61, 0
    %v92 = vsel %vm87, %v62, 0
    %94 = vmatprep.subr.bf16.mxu0 0
    %95 = vmatpush1.bf16.msra.mxu0 %v81
    %96 = vmatprep.subr.bf16.mxu0 0
    %97 = vmatpush1.bf16.msra.mxu0 %v82
    %98 = vmatprep.subr.bf16.mxu0 0
    %99 = vmatpush1.bf16.msra.mxu0 %v83
    %100 = vmatprep.subr.bf16.mxu0 0
    %101 = vmatpush1.bf16.msra.mxu0 0
    %102 = vmatprep.subr.bf16.mxu0 0
    %103 = vmatpush1.bf16.msra.mxu0 0
    %104 = vmatprep.subr.bf16.mxu0 0
    %105 = vmatpush1.bf16.msra.mxu0 0
    %106 = vmatprep.subr.bf16.mxu0 0
    %107 = vmatpush1.bf16.msra.mxu0 0
    %108 = vmatprep.subr.bf16.mxu0 0
    %109 = vmatpush1.bf16.msra.mxu0 0
    %110 = vmatprep.subr.bf16.mxu0 0
    %111 = vmatpush1.bf16.msra.mxu0 0
    %112 = vmatprep.subr.bf16.mxu0 0
    %113 = vmatpush1.bf16.msra.mxu0 0
    %114 = vmatprep.subr.bf16.mxu0 0
    %115 = vmatpush1.bf16.msra.mxu0 0
    %116 = vmatprep.subr.bf16.mxu0 0
    %117 = vmatpush1.bf16.msra.mxu0 0
    %118 = vmatprep.subr.bf16.mxu0 0
    %119 = vmatpush1.bf16.msra.mxu0 0
    %120 = vmatprep.subr.bf16.mxu0 0
    %121 = vmatpush1.bf16.msra.mxu0 0
    %122 = vmatprep.subr.bf16.mxu0 0
    %123 = vmatpush1.bf16.msra.mxu0 0
    %124 = vmatprep.subr.bf16.mxu0 0
    %125 = vmatpush1.bf16.msra.mxu0 0
    %126 = vmatprep.mubr.bf16.mxu0 0
    %127 = vmatmul.mubr.bf16.gmra.mrb[0].mxu0 %v89
    %v128 = vpop.f32.mrb[0].mxu0
    %v129 = vadd.f32 0.0, %v128
    %v130 = vpop.f32.mrb[0].mxu0
    %v131 = vpop.f32.mrb[0].mxu0
    %v132 = vadd.f32 0.0, %v131
    %v133 = vpop.f32.mrb[0].mxu0
    %134 = vmatprep.mubr.bf16.mxu0 0
    %135 = vmatmul.mubr.bf16.gmra.mrb[0].mxu0 %v92
    %v136 = vpop.f32.mrb[0].mxu0
    %v137 = vadd.f32 0.0, %v136
    %v138 = vpop.f32.mrb[0].mxu0
    %v139 = vpop.f32.mrb[0].mxu0
    %v140 = vadd.f32 0.0, %v139
    %v141 = vpop.f32.mrb[0].mxu0
    %142 = vdwg.mxu0
    %v143 = vadd.f32 %v53, %v129
    %v144 = vadd.f32 %v54, %v132
    %v145 = vadd.f32 %v55, %v137
    %v146 = vadd.f32 %v56, %v140
    %vm147 = vcmask 523264
    %148 = vst.msk [vmem:[#allocation2] sm:$0xff] %vm147, %v143
    %149 = vst.msk [vmem:[#allocation2 + $0x8] sm:$0xff] %vm147, %v144
    %150 = vst.msk [vmem:[#allocation2 + $0x10] sm:$0xff] %vm147, %v145
    %151 = vst.msk [vmem:[#allocation2 + $0x18] sm:$0xff] %vm147, %v146
    // Predicated region
    $region26: #{tpu_custom_call.1} parent=1 // pred_check
      %p152 = pneg %p44
    $region27: #{tpu_custom_call.1} parent=1 // pred_check_branch
      %154 = sbr.rel (%p152) target = $region29
    $region28: #{tpu_custom_call.1} parent=1 // pred_region
      %v155 = vld [vmem:[#allocation2] sm:$0xff]
      %v156 = vld [vmem:[#allocation2 + $0x8] sm:$0xff]
      %v157 = vld [vmem:[#allocation2 + $0x10] sm:$0xff]
      %v158 = vld [vmem:[#allocation2 + $0x18] sm:$0xff]
      %v159 = vld [vmem:[%s2] sm:$0x1]
      %v161 = vlaneseq
      %v162 = vshrl.u32 %v161, 7
      %v163 = vsub.s32 0, %v162
      %v164 = vrot.slane %v159, %v163
      %v166 = vadd.f32 %v155, %v164
      %v167 = vadd.f32 %v156, %v164
      %v168 = vadd.f32 %v157, %v164
      %v169 = vadd.f32 %v158, %v164
      %v170 = vpack.c.bf16 %v167, %v166
      %v171 = vpack.c.bf16 %v169, %v168
      %v174 = vunpack.c.l.b16 %v170
      %v175 = vunpack.c.h.b16 %v170
      %v176 = vunpack.c.l.b16 %v171
      %v177 = vunpack.c.h.b16 %v171
      %v178 = vpack.c.b16 %v174, %v174
      %v179 = vpack.c.b16 %v175, %v175
      %v180 = vpack.c.b16 %v176, %v176
      %v181 = vpack.c.b16 %v177, %v177
      %vm186 = vcmask 519168
      %187 = vst.msk [vmem:[#allocation8] sm:$0xf] %vm186, %v178
      %188 = vst.msk [vmem:[#allocation8 + $0x4] sm:$0xf] %vm186, %v179
      %189 = vst.msk [vmem:[#allocation8 + $0x8] sm:$0xf] %vm186, %v180
      %190 = vst.msk [vmem:[#allocation8 + $0xc] sm:$0xf] %vm186, %v181
    $region29: #{tpu_custom_call.1} parent=1 // pred_fallthru
      _
    // Predicated region
    $region30: #{tpu_custom_call.1} parent=1 // pred_check
      _
    $region31: #{tpu_custom_call.1} parent=1 // pred_check_branch
      %192 = sbr.rel (0) target = $region33
    $region32: #{tpu_custom_call.1} parent=1 // pred_region
      %s194 = ssub.s32 256, 256
      %195 = vsyncadd [#allocation5], %s194
      %s196 = sshll.u32 [#allocation8], 4
      %s197 = int_to_ptr.vmem [resolvable:$true] %s196
      %202 = dma.vmem_to_hbm [thread:$0]  %s197, 256, %s3, [#allocation5], 64, 64, 4
    $region33: #{tpu_custom_call.1} parent=1 // pred_fallthru
      _
    // Predicated region
    $region34: #{tpu_custom_call.1} parent=1 // pred_check
      _
    $region35: #{tpu_custom_call.1} parent=1 // pred_check_branch
      %204 = sbr.rel (0) target = $region37
    $region36: #{tpu_custom_call.1} parent=1 // pred_region
      %205 = dma.done [#allocation5], 256
    $region37: #{tpu_custom_call.1} parent=1 // pred_fallthru
      _
    %206 = vsyncpa [#allocation4], 1
    %207 = vsyncpa [#allocation7], 1
    %208 = vsyncpa [#allocation5], 1

</llo_original>
